<compile_context>
chip_gen: v7x
topology: tpu7x:2x2x1
jax: 0.10.0
libtpu: 0.0.40
codegen_flags: <defaults>
</compile_context>

<pallas_src>
import jax
import jax.numpy as jnp
from jax.experimental import pallas as pl
from jax.experimental.pallas import tpu as pltpu

N = 8          # number of graph nodes (A is N x N)
H = 32         # hidden1
BETA = 0.3
GAMMA = 0.1
LN_EPS = 1e-5  # torch.nn.LayerNorm default
_P = 8         # sublane-aligned header rows in the packed consts tile


def odefunc_kernel(x_ref, wT_ref, consts_ref, out_ref):
    # x_ref: (TB, 2N, H) — only the S,I rows of each sample are fetched (the R
    # block of h never feeds the dynamics).
    tb = x_ref.shape[0]
    tbn = tb * N

    bias = consts_ref[0:1, 0:H]            # (1, H)
    ln_w = consts_ref[1:2, 0:H]            # (1, H)
    ln_b = consts_ref[2:3, 0:H]            # (1, H)
    a_blk = consts_ref[_P:_P + tbn, 0:tbn]  # (TB*N, TB*N) block-diag kron(I,A)

    # --- Linear + ReLU fused across the whole batch tile -------------------
    x2 = x_ref[...].reshape(tb * 2 * N, H)              # leading-dim collapse
    h = jnp.dot(x2, wT_ref[...], preferred_element_type=jnp.float32) + bias
    h = jnp.maximum(h, 0.0)                              # (TB*2N, H)

    h3 = h.reshape(tb, 2 * N, H)
    S = h3[:, 0:N, :].reshape(tbn, H)                    # (TB*N, H)
    I = h3[:, N:2 * N, :].reshape(tbn, H)                # (TB*N, H)

    # --- SIR dynamics: one batched graph matmul (block-diagonal A) ---------
    AI = jnp.dot(a_blk, I, preferred_element_type=jnp.float32)  # (TB*N, H)
    AIS = AI * S
    dS = (-BETA) * AIS
    dI = BETA * AIS - GAMMA * I
    dR = GAMMA * I

    # --- Per-sample [dS; dI; dR] ordering, fused LayerNorm, one store ------
    d = jnp.concatenate(
        [dS.reshape(tb, N, H), dI.reshape(tb, N, H), dR.reshape(tb, N, H)],
        axis=1)                                          # (TB, 3N, H)
    mu = jnp.mean(d, axis=-1, keepdims=True)
    var = jnp.mean((d - mu) ** 2, axis=-1, keepdims=True)
    out_ref[...] = (d - mu) * jax.lax.rsqrt(var + LN_EPS) * ln_w + ln_b


def odefunc_forward_batched(xs, W, b, A, ln_w, ln_b, *, num_chunks=2):
    """xs: (B, 3N, H) float32 -> (B, 3N, H).

    One pallas_call for all B RHS evaluations.  num_chunks=2 keeps both v7x
    TensorCores busy; use num_chunks=1 on single-TC chips (v5e/v6e).
    """
    B = xs.shape[0]
    if num_chunks < 1 or B % num_chunks != 0:
        num_chunks = 1
    tb = B // num_chunks
    tbn = tb * N
    width = max(tbn, H)

    wT = W.T                                  # pre-transpose once in the wrapper

    # Pack bias / ln params / block-diagonal adjacency into ONE resident tile.
    a_blk = jnp.kron(jnp.eye(tb, dtype=jnp.float32), A.astype(jnp.float32))
    consts = jnp.zeros((_P + tbn, width), jnp.float32)
    consts = consts.at[0, :H].set(b)
    consts = consts.at[1, :H].set(ln_w)
    consts = consts.at[2, :H].set(ln_b)
    consts = consts.at[_P:, :tbn].set(a_blk)

    grid_spec = pltpu.PrefetchScalarGridSpec(
        num_scalar_prefetch=0,
        grid=(num_chunks,),
        in_specs=[
            # Only the first 2N rows of each sample are DMA'd (S,I blocks).
            pl.BlockSpec((tb, 2 * N, H), lambda i: (i, 0, 0)),
            # Weights / packed consts stay resident across the whole grid.
            pl.BlockSpec((H, H), lambda i: (0, 0)),
            pl.BlockSpec((_P + tbn, width), lambda i: (0, 0)),
        ],
        out_specs=pl.BlockSpec((tb, 3 * N, H), lambda i: (i, 0, 0)),
    )
    return pl.pallas_call(
        odefunc_kernel,
        out_shape=jax.ShapeDtypeStruct((B, 3 * N, H), jnp.float32),
        grid_spec=grid_spec,
        compiler_params=pltpu.CompilerParams(
            dimension_semantics=("parallel",)),
    )(xs, wT, consts)


def odefunc_forward(x, W, b, A, ln_w, ln_b):
    """Single RHS evaluation matching the PyTorch forward: x (3N, H) -> (3N, H)."""
    return odefunc_forward_batched(x[None], W, b, A, ln_w, ln_b, num_chunks=1)[0]


def odefunc_reference(x, W, b, A, ln_w, ln_b):
    h = jnp.maximum(x @ W.T + b, 0.0)
    S, I = h[:N], h[N:2 * N]
    AIS = (A @ I) * S
    dS = -BETA * AIS
    dI = BETA * AIS - GAMMA * I
    dR = GAMMA * I

    def ln(v):
        mu = jnp.mean(v, axis=-1, keepdims=True)
        var = jnp.mean((v - mu) ** 2, axis=-1, keepdims=True)
        return (v - mu) * jax.lax.rsqrt(var + LN_EPS) * ln_w + ln_b

    return jnp.concatenate([ln(dS), ln(dI), ln(dR)], axis=0)


if __name__ == "__main__":
    key = jax.random.PRNGKey(0)
    kx, kw, kb, ka, klw, klb = jax.random.split(key, 6)

    B = 16  # batch of RHS evaluations (e.g. RK stages / time points of a solver)
    xs = jax.random.normal(kx, (B, 3 * N, H), dtype=jnp.float32)
    W = jax.random.normal(kw, (H, H), dtype=jnp.float32) * (1.0 / jnp.sqrt(H))
    b = jax.random.normal(kb, (H,), dtype=jnp.float32) * 0.1
    A = (jax.random.uniform(ka, (N, N), dtype=jnp.float32) > 0.5).astype(jnp.float32)
    ln_w = 1.0 + 0.1 * jax.random.normal(klw, (H,), dtype=jnp.float32)
    ln_b = 0.1 * jax.random.normal(klb, (H,), dtype=jnp.float32)

    # Batched kernel (main path: one launch, whole batch per grid chunk).
    out_b = jax.block_until_ready(odefunc_forward_batched(xs, W, b, A, ln_w, ln_b))
    ref_b = jax.vmap(lambda xi: odefunc_reference(xi, W, b, A, ln_w, ln_b))(xs)
    assert out_b.shape == (B, 3 * N, H)
    assert jnp.allclose(out_b, ref_b, atol=1e-3, rtol=1e-3), "batched mismatch"

    # Single-call path (exactly the PyTorch forward signature semantics).
    out_1 = jax.block_until_ready(odefunc_forward(xs[0], W, b, A, ln_w, ln_b))
    assert out_1.shape == (3 * N, H)
    assert jnp.allclose(out_1, ref_b[0], atol=1e-3, rtol=1e-3), "single-call mismatch"

    print("KERNEL_OK")
</pallas_src>

<mosaic_0001>
module attributes {stable_mosaic.version = 11 : i64} {
  func.func @odefunc_kernel(%arg0: i32, %arg1: memref<8x16x32xf32, #tpu.memory_space<vmem>>, %arg2: memref<32x32xf32, #tpu.memory_space<vmem>>, %arg3: memref<72x64xf32, #tpu.memory_space<vmem>>, %arg4: memref<8x24x32xf32, #tpu.memory_space<vmem>>) attributes {dimension_semantics = [#tpu.dimension_semantics<parallel>], iteration_bounds = array<i64: 2>, scalar_prefetch = 0 : i64, scratch_operands = 0 : i64, tpu.core_type = #tpu.core_type<tc>, window_params = [{transform_indices = @transform_0, window_bounds = array<i64: 8, 16, 32>}, {pipeline_mode = #tpu.pipeline_mode<synchronous>, transform_indices = @transform_1, window_bounds = array<i64: 32, 32>}, {pipeline_mode = #tpu.pipeline_mode<synchronous>, transform_indices = @transform_2, window_bounds = array<i64: 72, 64>}, {transform_indices = @transform_3, window_bounds = array<i64: 8, 24, 32>}]} {
    %c0 = arith.constant 0 : index
    %c0_0 = arith.constant 0 : index
    %0 = vector.load %arg3[%c0, %c0_0] : memref<72x64xf32, #tpu.memory_space<vmem>>, vector<1x32xf32>
    %c1 = arith.constant 1 : index
    %c0_1 = arith.constant 0 : index
    %1 = vector.load %arg3[%c1, %c0_1] : memref<72x64xf32, #tpu.memory_space<vmem>>, vector<1x32xf32>
    %c2 = arith.constant 2 : index
    %c0_2 = arith.constant 0 : index
    %2 = vector.load %arg3[%c2, %c0_2] : memref<72x64xf32, #tpu.memory_space<vmem>>, vector<1x32xf32>
    %c8 = arith.constant 8 : index
    %c0_3 = arith.constant 0 : index
    %3 = vector.load %arg3[%c8, %c0_3] : memref<72x64xf32, #tpu.memory_space<vmem>>, vector<64x64xf32>
    %c0_4 = arith.constant 0 : index
    %c0_5 = arith.constant 0 : index
    %c0_6 = arith.constant 0 : index
    %4 = vector.load %arg1[%c0_4, %c0_5, %c0_6] : memref<8x16x32xf32, #tpu.memory_space<vmem>>, vector<8x16x32xf32>
    %5 = vector.shape_cast %4 : vector<8x16x32xf32> to vector<128x32xf32>
    %c0_7 = arith.constant 0 : index
    %c0_8 = arith.constant 0 : index
    %6 = vector.load %arg2[%c0_7, %c0_8] : memref<32x32xf32, #tpu.memory_space<vmem>>, vector<32x32xf32>
    %cst = arith.constant dense<0.000000e+00> : vector<128x32xf32>
    %7 = tpu.matmul %5, %6, %cst {dimension_numbers = #tpu.dot_dimension_numbers<[1], [0], [0], [1], [0, 0, 1, 1], [], []>} : vector<128x32xf32>, vector<32x32xf32>, vector<128x32xf32> -> vector<128x32xf32>
    %8 = vector.broadcast %0 : vector<1x32xf32> to vector<128x32xf32>
    %9 = arith.addf %7, %8 : vector<128x32xf32>
    %cst_9 = arith.constant 0.000000e+00 : f32
    %10 = vector.broadcast %cst_9 : f32 to vector<128x32xf32>
    %11 = arith.maximumf %9, %10 : vector<128x32xf32>
    %12 = vector.shape_cast %11 : vector<128x32xf32> to vector<8x16x32xf32>
    %13 = vector.extract_strided_slice %12 {offsets = [0, 0, 0], sizes = [8, 8, 32], strides = [1, 1, 1]} : vector<8x16x32xf32> to vector<8x8x32xf32>
    %14 = vector.shape_cast %13 : vector<8x8x32xf32> to vector<64x32xf32>
    %15 = vector.extract_strided_slice %12 {offsets = [0, 8, 0], sizes = [8, 8, 32], strides = [1, 1, 1]} : vector<8x16x32xf32> to vector<8x8x32xf32>
    %16 = vector.shape_cast %15 : vector<8x8x32xf32> to vector<64x32xf32>
    %cst_10 = arith.constant dense<0.000000e+00> : vector<64x32xf32>
    %17 = tpu.matmul %3, %16, %cst_10 {dimension_numbers = #tpu.dot_dimension_numbers<[1], [0], [0], [1], [0, 0, 1, 1], [], []>} : vector<64x64xf32>, vector<64x32xf32>, vector<64x32xf32> -> vector<64x32xf32>
    %18 = arith.mulf %17, %14 : vector<64x32xf32>
    %cst_11 = arith.constant -3.000000e-01 : f32
    %19 = vector.broadcast %cst_11 : f32 to vector<64x32xf32>
    %20 = arith.mulf %19, %18 : vector<64x32xf32>
    %cst_12 = arith.constant 3.000000e-01 : f32
    %21 = vector.broadcast %cst_12 : f32 to vector<64x32xf32>
    %22 = arith.mulf %21, %18 : vector<64x32xf32>
    %cst_13 = arith.constant 1.000000e-01 : f32
    %23 = vector.broadcast %cst_13 : f32 to vector<64x32xf32>
    %24 = arith.mulf %23, %16 : vector<64x32xf32>
    %25 = arith.subf %22, %24 : vector<64x32xf32>
    %cst_14 = arith.constant 1.000000e-01 : f32
    %26 = vector.broadcast %cst_14 : f32 to vector<64x32xf32>
    %27 = arith.mulf %26, %16 : vector<64x32xf32>
    %28 = vector.shape_cast %20 : vector<64x32xf32> to vector<8x8x32xf32>
    %29 = vector.shape_cast %25 : vector<64x32xf32> to vector<8x8x32xf32>
    %30 = vector.shape_cast %27 : vector<64x32xf32> to vector<8x8x32xf32>
    %31 = tpu.concatenate %28, %29, %30 in 1 : vector<8x8x32xf32>, vector<8x8x32xf32>, vector<8x8x32xf32> -> vector<8x24x32xf32>
    %cst_15 = arith.constant dense<0.000000e+00> : vector<8x24xf32>
    %32 = vector.multi_reduction <add>, %31, %cst_15 [2] : vector<8x24x32xf32> to vector<8x24xf32>
    %33 = vector.shape_cast %32 : vector<8x24xf32> to vector<8x24x1xf32>
    %cst_16 = arith.constant 3.200000e+01 : f32
    %34 = vector.broadcast %cst_16 : f32 to vector<8x24x1xf32>
    %35 = arith.divf %33, %34 : vector<8x24x1xf32>
    %36 = vector.broadcast %35 : vector<8x24x1xf32> to vector<8x24x32xf32>
    %37 = arith.subf %31, %36 : vector<8x24x32xf32>
    %38 = arith.mulf %37, %37 : vector<8x24x32xf32>
    %cst_17 = arith.constant dense<0.000000e+00> : vector<8x24xf32>
    %39 = vector.multi_reduction <add>, %38, %cst_17 [2] : vector<8x24x32xf32> to vector<8x24xf32>
    %40 = vector.shape_cast %39 : vector<8x24xf32> to vector<8x24x1xf32>
    %cst_18 = arith.constant 3.200000e+01 : f32
    %41 = vector.broadcast %cst_18 : f32 to vector<8x24x1xf32>
    %42 = arith.divf %40, %41 : vector<8x24x1xf32>
    %43 = vector.broadcast %35 : vector<8x24x1xf32> to vector<8x24x32xf32>
    %44 = arith.subf %31, %43 : vector<8x24x32xf32>
    %cst_19 = arith.constant 9.99999974E-6 : f32
    %45 = vector.broadcast %cst_19 : f32 to vector<8x24x1xf32>
    %46 = arith.addf %42, %45 : vector<8x24x1xf32>
    %47 = math.rsqrt %46 : vector<8x24x1xf32>
    %48 = vector.broadcast %47 : vector<8x24x1xf32> to vector<8x24x32xf32>
    %49 = arith.mulf %44, %48 : vector<8x24x32xf32>
    %50 = vector.shape_cast %1 : vector<1x32xf32> to vector<1x1x32xf32>
    %51 = vector.broadcast %50 : vector<1x1x32xf32> to vector<8x24x32xf32>
    %52 = arith.mulf %49, %51 : vector<8x24x32xf32>
    %53 = vector.shape_cast %2 : vector<1x32xf32> to vector<1x1x32xf32>
    %54 = vector.broadcast %53 : vector<1x1x32xf32> to vector<8x24x32xf32>
    %55 = arith.addf %52, %54 : vector<8x24x32xf32>
    %c0_20 = arith.constant 0 : index
    %c0_21 = arith.constant 0 : index
    %c0_22 = arith.constant 0 : index
    %56 = vector.load %arg4[%c0_20, %c0_21, %c0_22] : memref<8x24x32xf32, #tpu.memory_space<vmem>>, vector<8x24x32xf32>
    tpu.vector_store %arg4[%c0_20, %c0_21, %c0_22], %55 {strides = array<i32>} : memref<8x24x32xf32, #tpu.memory_space<vmem>>, vector<8x24x32xf32>,
    return
  }
  func.func @transform_0(%arg0: i32) -> (i32, i32, i32) {
    %c0_i32 = arith.constant 0 : i32
    %c0_i32_0 = arith.constant 0 : i32
    %c0_i32_1 = arith.constant 0 : i32
    return %arg0, %c0_i32, %c0_i32_0 : i32, i32, i32
  }
  func.func @transform_1(%arg0: i32) -> (i32, i32) {
    %c0_i32 = arith.constant 0 : i32
    %c0_i32_0 = arith.constant 0 : i32
    %c0_i32_1 = arith.constant 0 : i32
    return %c0_i32, %c0_i32_0 : i32, i32
  }
  func.func @transform_2(%arg0: i32) -> (i32, i32) {
    %c0_i32 = arith.constant 0 : i32
    %c0_i32_0 = arith.constant 0 : i32
    %c0_i32_1 = arith.constant 0 : i32
    return %c0_i32, %c0_i32_0 : i32, i32
  }
  func.func @transform_3(%arg0: i32) -> (i32, i32, i32) {
    %c0_i32 = arith.constant 0 : i32
    %c0_i32_0 = arith.constant 0 : i32
    %c0_i32_1 = arith.constant 0 : i32
    return %arg0, %c0_i32, %c0_i32_0 : i32, i32, i32
  }
}

</mosaic_0001>

<llo_original>
// kernel: tpu_custom_call.1
$region0: #{tpu_custom_call.1}
  #allocation0 [shape = 'u32[]', space=smem, size = 0x4, offset = 0x4, fixed_abs, tag = 'smem constant byte address 0x4 - core index']
  #allocation1 [shape = 'u32[144,128]{1,0:T(1,128)}', space=vmem, size = 0x12000, scoped, tag = 'internal scratch']
  #allocation6 [shape = 's32[]', space=sflag, size = 0x4, offset = 0, fixed_abs, tag = 'sflag constant byte address 0x0 - dummy sync flag']
  %s0 = inlined_call_operand.hbm [shape: f32[16,24,32], index: 0, kind: input, shape index: {}]
  %s1 = inlined_call_operand.vmem [shape: f32[32,32], index: 1, kind: input, shape index: {}]
  %s2 = inlined_call_operand.vmem [shape: f32[72,64], index: 2, kind: input, shape index: {}]
  %s3 = inlined_call_operand.hbm [shape: f32[16,24,32], index: 3, kind: output, shape index: {}]
  %s4 = sld [smem:[#allocation0]]
  $region49: #{tpu_custom_call.1} parent=0
    _
  %s6 = ssub.s32 1, %s4
  %s7 = scalar_select 0, %s6, %s4
  $region1: #{tpu_custom_call.1} parent=0
    #allocation2 [shape = 'u8[131072]{0}', space=vmem, size = 0x20000, scoped, tag = 'input window, operand 0']
    #allocation3 [shape = 's32[2]{0}', space=sflag, size = 0x8, scoped, tag = 'scoped memory for tpu_custom_call.1']
    #allocation4 [shape = 's32[2]{0}', space=sflag, size = 0x8, scoped, tag = 'scoped memory for tpu_custom_call.1']
    #allocation5 [shape = 'u8[196608]{0}', space=vmem, size = 0x30000, scoped, tag = 'output window, operand 0']
    %8 = vsyncpa [#allocation3], 0
    %s9 = scalar_lea.sflag [#allocation3], 1
    %10 = vsyncpa %s9, 0
    %11 = vsyncpa [#allocation4], 0
    %s12 = scalar_lea.sflag [#allocation4], 1
    %13 = vsyncpa %s12, 0
    loop: start=0, step=1, limit=4
    $region2: #{tpu_custom_call.1} parent=1 // loop_pre_header
      _
    $region3: #{tpu_custom_call.1} parent=1 // loop_header
      %s15 = sphi 0, %s19
      %p16 = scmp.ge.s32.totalorder %s15, 4
      %s25 = sphi 0, %s27
      %s28 = sphi 0, %s25
      %s29 = sphi 0, %s28
      %s45 = sphi 0, %s29
      %s49 = sphi 0, %s49
      %s51 = sphi 0, %s49
      %s52 = sphi 0, %s51
      %s66 = sphi 0, %s52
      %s70 = sphi 0, %s70
      %s72 = sphi 0, %s70
      %s73 = sphi 0, %s72
      %s87 = sphi 0, %s73
      %s93 = sphi 0, %s95
      %s96 = sphi 0, %s93
      %s97 = sphi 0, %s96
      %s113 = sphi 0, %s97
    $region4: #{tpu_custom_call.1} parent=1 // loop_header_branch
      %18 = sbr.rel (%p16) target = $region8
    $region5: #{tpu_custom_call.1} parent=1 // loop_body
      %s20 = ssub.s32 %s15, 1
      %s21 = ssub.s32 %s15, 2
      %s22 = sadd.s32 %s15, 1
      %s23 = ssub.s32 %s15, %s22
      %p24 = scmp.eq.s32.totalorder %s23, 0
      %s26 = sadd.s32 %s25, 1
      %s27 = scalar_select %p24, %s25, %s26
      %p30 = pneg %p24
      %p31 = scmp.eq.s32.totalorder %s15, 1
      %p32 = por %p30, %p31
      %p33 = scmp.ne.s32.totalorder %s25, %s28
      %p34 = scmp.eq.s32.totalorder %s15, 0
      %p35 = por %p33, %p34
      %p36 = scmp.ne.s32.totalorder %s25, %s28
      %p37 = scmp.eq.s32.totalorder %s20, 1
      %p38 = por %p36, %p37
      %p39 = scmp.ne.s32.totalorder %s28, %s29
      %p40 = scmp.eq.s32.totalorder %s20, 0
      %p41 = por %p39, %p40
      %p42 = scmp.ne.s32.totalorder %s28, %s29
      %p43 = scmp.eq.s32.totalorder %s21, 1
      %p44 = por %p42, %p43
      %p46 = scmp.ne.s32.totalorder %s29, %s45
      %p47 = scmp.eq.s32.totalorder %s21, 0
      %p48 = por %p46, %p47
      %s50 = sadd.s32 %s49, 1
      %p53 = scmp.eq.s32.totalorder %s15, 1
      %p54 = scmp.ne.s32.totalorder %s49, %s51
      %p55 = scmp.eq.s32.totalorder %s15, 0
      %p56 = por %p54, %p55
      %p57 = scmp.ne.s32.totalorder %s49, %s51
      %p58 = scmp.eq.s32.totalorder %s20, 1
      %p59 = por %p57, %p58
      %p60 = scmp.ne.s32.totalorder %s51, %s52
      %p61 = scmp.eq.s32.totalorder %s20, 0
      %p62 = por %p60, %p61
      %p63 = scmp.ne.s32.totalorder %s51, %s52
      %p64 = scmp.eq.s32.totalorder %s21, 1
      %p65 = por %p63, %p64
      %p67 = scmp.ne.s32.totalorder %s52, %s66
      %p68 = scmp.eq.s32.totalorder %s21, 0
      %p69 = por %p67, %p68
      %s71 = sadd.s32 %s70, 1
      %p74 = scmp.eq.s32.totalorder %s15, 1
      %p75 = scmp.ne.s32.totalorder %s70, %s72
      %p76 = scmp.eq.s32.totalorder %s15, 0
      %p77 = por %p75, %p76
      %p78 = scmp.ne.s32.totalorder %s70, %s72
      %p79 = scmp.eq.s32.totalorder %s20, 1
      %p80 = por %p78, %p79
      %p81 = scmp.ne.s32.totalorder %s72, %s73
      %p82 = scmp.eq.s32.totalorder %s20, 0
      %p83 = por %p81, %p82
      %p84 = scmp.ne.s32.totalorder %s72, %s73
      %p85 = scmp.eq.s32.totalorder %s21, 1
      %p86 = por %p84, %p85
      %p88 = scmp.ne.s32.totalorder %s73, %s87
      %p89 = scmp.eq.s32.totalorder %s21, 0
      %p90 = por %p88, %p89
      %s91 = ssub.s32 %s15, %s22
      %p92 = scmp.eq.s32.totalorder %s91, 0
      %s94 = sadd.s32 %s93, 1
      %s95 = scalar_select %p92, %s93, %s94
      %p98 = pneg %p92
      %p99 = scmp.eq.s32.totalorder %s15, 1
      %p100 = por %p98, %p99
      %p101 = scmp.ne.s32.totalorder %s93, %s96
      %p102 = scmp.eq.s32.totalorder %s15, 0
      %p103 = por %p101, %p102
      %p104 = scmp.ne.s32.totalorder %s93, %s96
      %p105 = scmp.eq.s32.totalorder %s20, 1
      %p106 = por %p104, %p105
      %p107 = scmp.ne.s32.totalorder %s96, %s97
      %p108 = scmp.eq.s32.totalorder %s20, 0
      %p109 = por %p107, %p108
      %p110 = scmp.ne.s32.totalorder %s96, %s97
      %p111 = scmp.eq.s32.totalorder %s21, 1
      %p112 = por %p110, %p111
      %p114 = scmp.ne.s32.totalorder %s97, %s113
      %p115 = scmp.eq.s32.totalorder %s21, 0
      %p116 = por %p114, %p115
      %p117 = scmp.le.s32.totalorder 1, %s15
      %p118 = scmp.lt.s32.totalorder %s15, 3
      %p119 = pnand %p117, %p118
      %p120 = pneg %p119
      // Predicated region
      $region9: #{tpu_custom_call.1} parent=5 // pred_check
        _
      $region10: #{tpu_custom_call.1} parent=5 // pred_check_branch
        %122 = sbr.rel (%p119) target = $region12
      $region11: #{tpu_custom_call.1} parent=5 // pred_region
        %s123 = ssub.s32 %s15, 1
        // Predicated region
        $region13: #{tpu_custom_call.1} parent=11 // pred_check
          %p124 = pneg %p62
        $region14: #{tpu_custom_call.1} parent=11 // pred_check_branch
          %126 = sbr.rel (%p124) target = $region16
        $region15: #{tpu_custom_call.1} parent=11 // pred_region
          _
        $region16: #{tpu_custom_call.1} parent=11 // pred_fallthru
          _
        // Predicated region
        $region17: #{tpu_custom_call.1} parent=11 // pred_check
          %p127 = pneg %p83
        $region18: #{tpu_custom_call.1} parent=11 // pred_check_branch
          %129 = sbr.rel (%p127) target = $region20
        $region19: #{tpu_custom_call.1} parent=11 // pred_region
          _
        $region20: #{tpu_custom_call.1} parent=11 // pred_fallthru
          _
      $region12: #{tpu_custom_call.1} parent=5 // pred_fallthru
        _
      %p130 = scmp.lt.s32.totalorder %s15, 2
      // Predicated region
      $region21: #{tpu_custom_call.1} parent=5 // pred_check
        %p131 = pneg %p130
      $region22: #{tpu_custom_call.1} parent=5 // pred_check_branch
        %133 = sbr.rel (%p131) target = $region24
      $region23: #{tpu_custom_call.1} parent=5 // pred_region
        // Predicated region
        $region25: #{tpu_custom_call.1} parent=23 // pred_check
          %p134 = pneg %p35
        $region26: #{tpu_custom_call.1} parent=23 // pred_check_branch
          %136 = sbr.rel (%p134) target = $region28
        $region27: #{tpu_custom_call.1} parent=23 // pred_region
          #allocation7 [shape = 'u32[6]{0}', space=smem, size = 0x18, scoped, tag = 'DMA stride descriptor']
          %s137 = sand.u32 %s25, 1
          %s138 = scalar_lea.sflag [#allocation3], %s137
          %s139 = sand.u32 %s25, 1
          %s140 = smul.addr %s139, 128
          %s141 = scalar_lea.vmem [#allocation2], %s140
          %s142 = smul.u32 8, %s15
          %s144 = ssub.s32 2048, 2048
          %145 = vsyncadd %s138, %s144
          %s146 = smul.addr %s142, 3
          %s147 = smul.addr %s146, 128
          %s148 = scalar_lea.hbm %s0, %s147
          %s150 = sshll.u32 1, 14
          %s151 = sxor.u32 4294967295, %s150
          %s153 = sld [smem:[#allocation0]]
          %s154 = sadd.s32 2, %s153
          %s156 = sshll.u32 7, 26
          %s157 = sxor.u32 4294967295, %s156
          %s158 = sand.u32 0, %s157
          %s159 = sshll.u32 %s154, 26
          %s160 = sor.u32 %s158, %s159
          %s161 = sshll.u32 %s141, 4
          %s162 = int_to_ptr.vmem [resolvable:$true] %s161
          %168 = sst [smem:[#allocation7]] 384
          %s169 = scalar_lea.smem [#allocation7], 1
          %170 = sst [smem:[%s169]] 256
          %s171 = scalar_lea.smem [#allocation7], 2
          %172 = sst [smem:[%s171]] 2
          %s173 = scalar_lea.smem [#allocation7], 3
          %174 = sst [smem:[%s173]] 128
          %s175 = scalar_lea.smem [#allocation7], 4
          %176 = sst [smem:[%s175]] 128
          %s177 = scalar_lea.smem [#allocation7], 5
          %178 = sst [smem:[%s177]] 8
          %180 = dma.general %s148, 2048, %s162, %s138, [#allocation6], [#allocation7], %s160, 0
        $region28: #{tpu_custom_call.1} parent=23 // pred_fallthru
          _
      $region24: #{tpu_custom_call.1} parent=5 // pred_fallthru
        _
      %p181 = scmp.le.s32.totalorder 1, %s15
      %p182 = scmp.lt.s32.totalorder %s15, 3
      %p183 = pnand %p181, %p182
      %p184 = pneg %p183
      // Predicated region
      $region29: #{tpu_custom_call.1} parent=5 // pred_check
        _
      $region30: #{tpu_custom_call.1} parent=5 // pred_check_branch
        %186 = sbr.rel (%p183) target = $region32
      $region31: #{tpu_custom_call.1} parent=5 // pred_region
        %s187 = ssub.s32 %s15, 1
        %s188 = sand.u32 %s28, 1
        %s189 = scalar_lea.sflag [#allocation3], %s188
        %s190 = sand.u32 %s28, 1
        %s191 = smul.addr %s190, 128
        %s192 = scalar_lea.vmem [#allocation2], %s191
        // Predicated region
        $region33: #{tpu_custom_call.1} parent=31 // pred_check
          %p193 = pneg %p41
        $region34: #{tpu_custom_call.1} parent=31 // pred_check_branch
          %195 = sbr.rel (%p193) target = $region36
        $region35: #{tpu_custom_call.1} parent=31 // pred_region
          %196 = dma.done %s189, 2048
        $region36: #{tpu_custom_call.1} parent=31 // pred_fallthru
          _
        %s197 = sand.u32 %s28, 1
        %s198 = scalar_lea.sflag [#allocation3], %s197
        %s199 = sand.u32 %s28, 1
        %s200 = smul.addr %s199, 128
        %s201 = scalar_lea.vmem [#allocation2], %s200
        %p202 = pneg %p41
        %p203 = pneg %p38
        %p204 = pneg %p62
        %p205 = pneg %p59
        %p206 = pneg %p83
        %p207 = pneg %p80
        %p208 = pneg %p109
        %p209 = pneg %p106
        %s210 = sand.u32 %s96, 1
        %s211 = scalar_lea.sflag [#allocation4], %s210
        %s212 = sand.u32 %s96, 1
        %s213 = smul.addr %s212, 192
        %s214 = scalar_lea.vmem [#allocation5], %s213
        %s215 = smul.u32 8, %s20
        %s216 = smul.u32 8, %s20
        %v217 = vld [vmem:[%s2] sm:$0x1]
        %v218 = vld [vmem:[%s2 + $0x1] sm:$0x1]
        %v219 = vld [vmem:[%s2 + $0x2] sm:$0x1]
        %v220 = vld [vmem:[%s2 + $0x8] sm:$0xff]
        %v221 = vld [vmem:[%s2 + $0x10] sm:$0xff]
        %v222 = vld [vmem:[%s2 + $0x18] sm:$0xff]
        %v223 = vld [vmem:[%s2 + $0x20] sm:$0xff]
        %v224 = vld [vmem:[%s2 + $0x28] sm:$0xff]
        %v225 = vld [vmem:[%s2 + $0x30] sm:$0xff]
        %v226 = vld [vmem:[%s2 + $0x38] sm:$0xff]
        %v227 = vld [vmem:[%s2 + $0x40] sm:$0xff]
        %v228 = vld [vmem:[%s192] sm:$0xff]
        %v229 = vld [vmem:[%s192 + $0x8] sm:$0xff]
        %v230 = vld [vmem:[%s192 + $0x10] sm:$0xff]
        %v231 = vld [vmem:[%s192 + $0x18] sm:$0xff]
        %v232 = vld [vmem:[%s192 + $0x20] sm:$0xff]
        %v233 = vld [vmem:[%s192 + $0x28] sm:$0xff]
        %v234 = vld [vmem:[%s192 + $0x30] sm:$0xff]
        %v235 = vld [vmem:[%s192 + $0x38] sm:$0xff]
        %v236 = vld [vmem:[%s192 + $0x40] sm:$0xff]
        %v237 = vld [vmem:[%s192 + $0x48] sm:$0xff]
        %v238 = vld [vmem:[%s192 + $0x50] sm:$0xff]
        %v239 = vld [vmem:[%s192 + $0x58] sm:$0xff]
        %v240 = vld [vmem:[%s192 + $0x60] sm:$0xff]
        %v241 = vld [vmem:[%s192 + $0x68] sm:$0xff]
        %v242 = vld [vmem:[%s192 + $0x70] sm:$0xff]
        %v243 = vld [vmem:[%s192 + $0x78] sm:$0xff]
        %v244 = vld [vmem:[%s1] sm:$0xff]
        %v245 = vld [vmem:[%s1 + $0x8] sm:$0xff]
        %v246 = vld [vmem:[%s1 + $0x10] sm:$0xff]
        %v247 = vld [vmem:[%s1 + $0x18] sm:$0xff]
        %v248 = vlaneseq
        %v249 = vshrl.u32 %v248, 7
        %v250 = vsub.s32 0, %v249
        %v251 = vrot.slane %v217, %v250
        %vm252 = vcmask 261120
        %v254 = vsel %vm252, %v228, 0
        %v257 = vsel %vm252, %v229, 0
        %v260 = vsel %vm252, %v230, 0
        %v263 = vsel %vm252, %v231, 0
        %v266 = vsel %vm252, %v232, 0
        %v269 = vsel %vm252, %v233, 0
        %v272 = vsel %vm252, %v234, 0
        %v275 = vsel %vm252, %v235, 0
        %v278 = vsel %vm252, %v236, 0
        %v281 = vsel %vm252, %v237, 0
        %v284 = vsel %vm252, %v238, 0
        %v287 = vsel %vm252, %v239, 0
        %v290 = vsel %vm252, %v240, 0
        %v293 = vsel %vm252, %v241, 0
        %v296 = vsel %vm252, %v242, 0
        %v299 = vsel %vm252, %v243, 0
        %301 = vmatprep.subr.mxu0 0.0
        %302 = vmatpush1.msra.mxu0 %v244
        %303 = vmatprep.subr.mxu0 0.0
        %304 = vmatpush1.msra.mxu0 %v245
        %305 = vmatprep.subr.mxu0 0.0
        %306 = vmatpush1.msra.mxu0 %v246
        %307 = vmatprep.subr.mxu0 0.0
        %308 = vmatpush1.msra.mxu0 %v247
        %309 = vmatprep.subr.mxu0 0.0
        %310 = vmatpush1.msra.mxu0 0.0
        %311 = vmatprep.subr.mxu0 0.0
        %312 = vmatpush1.msra.mxu0 0.0
        %313 = vmatprep.subr.mxu0 0.0
        %314 = vmatpush1.msra.mxu0 0.0
        %315 = vmatprep.subr.mxu0 0.0
        %316 = vmatpush1.msra.mxu0 0.0
        %317 = vmatprep.subr.mxu0 0.0
        %318 = vmatpush1.msra.mxu0 0.0
        %319 = vmatprep.subr.mxu0 0.0
        %320 = vmatpush1.msra.mxu0 0.0
        %321 = vmatprep.subr.mxu0 0.0
        %322 = vmatpush1.msra.mxu0 0.0
        %323 = vmatprep.subr.mxu0 0.0
        %324 = vmatpush1.msra.mxu0 0.0
        %325 = vmatprep.subr.mxu0 0.0
        %326 = vmatpush1.msra.mxu0 0.0
        %327 = vmatprep.subr.mxu0 0.0
        %328 = vmatpush1.msra.mxu0 0.0
        %329 = vmatprep.subr.mxu0 0.0
        %330 = vmatpush1.msra.mxu0 0.0
        %331 = vmatprep.subr.mxu0 0.0
        %332 = vmatpush1.msra.mxu0 0.0
        %333 = vmatprep.subr.mxu0 0.0
        %334 = vmatpush1.msra.mxu0 0.0
        %335 = vmatprep.subr.mxu0 0.0
        %336 = vmatpush1.msra.mxu0 0.0
        %337 = vmatprep.subr.mxu0 0.0
        %338 = vmatpush1.msra.mxu0 0.0
        %339 = vmatprep.subr.mxu0 0.0
        %340 = vmatpush1.msra.mxu0 0.0
        %341 = vmatprep.subr.mxu0 0.0
        %342 = vmatpush1.msra.mxu0 0.0
        %343 = vmatprep.subr.mxu0 0.0
        %344 = vmatpush1.msra.mxu0 0.0
        %345 = vmatprep.subr.mxu0 0.0
        %346 = vmatpush1.msra.mxu0 0.0
        %347 = vmatprep.subr.mxu0 0.0
        %348 = vmatpush1.msra.mxu0 0.0
        %349 = vmatprep.subr.mxu0 0.0
        %350 = vmatpush1.msra.mxu0 0.0
        %351 = vmatprep.subr.mxu0 0.0
        %352 = vmatpush1.msra.mxu0 0.0
        %353 = vmatprep.subr.mxu0 0.0
        %354 = vmatpush1.msra.mxu0 0.0
        %355 = vmatprep.subr.mxu0 0.0
        %356 = vmatpush1.msra.mxu0 0.0
        %357 = vmatprep.subr.mxu0 0.0
        %358 = vmatpush1.msra.mxu0 0.0
        %359 = vmatprep.subr.mxu0 0.0
        %360 = vmatpush1.msra.mxu0 0.0
        %361 = vmatprep.subr.mxu0 0.0
        %362 = vmatpush1.msra.mxu0 0.0
        %363 = vmatprep.subr.mxu0 0.0
        %364 = vmatpush1.msra.mxu0 0.0
        %365 = vmatprep.mubr.f32.mxu0 0.0
        %366 = vmatmul.mubr.f32.gmra.mrb[0].mxu0 %v254
        %v367 = vpop.f32.mrb[0].mxu0
        %v368 = vadd.f32 %v251, %v367
        %v369 = vpop.f32.mrb[0].mxu0
        %370 = vmatprep.mubr.f32.mxu0 0.0
        %371 = vmatmul.mubr.f32.gmra.mrb[0].mxu0 %v257
        %v372 = vpop.f32.mrb[0].mxu0
        %v373 = vadd.f32 %v251, %v372
        %v374 = vpop.f32.mrb[0].mxu0
        %375 = vmatprep.mubr.f32.mxu0 0.0
        %376 = vmatmul.mubr.f32.gmra.mrb[0].mxu0 %v260
        %v377 = vpop.f32.mrb[0].mxu0
        %v378 = vadd.f32 %v251, %v377
        %v379 = vpop.f32.mrb[0].mxu0
        %380 = vmatprep.mubr.f32.mxu0 0.0
        %381 = vmatmul.mubr.f32.gmra.mrb[0].mxu0 %v263
        %v382 = vpop.f32.mrb[0].mxu0
        %v383 = vadd.f32 %v251, %v382
        %v384 = vpop.f32.mrb[0].mxu0
        %385 = vmatprep.mubr.f32.mxu0 0.0
        %386 = vmatmul.mubr.f32.gmra.mrb[0].mxu0 %v266
        %v387 = vpop.f32.mrb[0].mxu0
        %v388 = vadd.f32 %v251, %v387
        %v389 = vpop.f32.mrb[0].mxu0
        %390 = vmatprep.mubr.f32.mxu0 0.0
        %391 = vmatmul.mubr.f32.gmra.mrb[0].mxu0 %v269
        %v392 = vpop.f32.mrb[0].mxu0
        %v393 = vadd.f32 %v251, %v392
        %v394 = vpop.f32.mrb[0].mxu0
        %395 = vmatprep.mubr.f32.mxu0 0.0
        %396 = vmatmul.mubr.f32.gmra.mrb[0].mxu0 %v272
        %v397 = vpop.f32.mrb[0].mxu0
        %v398 = vadd.f32 %v251, %v397
        %v399 = vpop.f32.mrb[0].mxu0
        %400 = vmatprep.mubr.f32.mxu0 0.0
        %401 = vmatmul.mubr.f32.gmra.mrb[0].mxu0 %v275
        %v402 = vpop.f32.mrb[0].mxu0
        %v403 = vadd.f32 %v251, %v402
        %v404 = vpop.f32.mrb[0].mxu0
        %405 = vmatprep.mubr.f32.mxu0 0.0
        %406 = vmatmul.mubr.f32.gmra.mrb[0].mxu0 %v278
        %v407 = vpop.f32.mrb[0].mxu0
        %v408 = vadd.f32 %v251, %v407
        %v409 = vpop.f32.mrb[0].mxu0
        %410 = vmatprep.mubr.f32.mxu0 0.0
        %411 = vmatmul.mubr.f32.gmra.mrb[0].mxu0 %v281
        %v412 = vpop.f32.mrb[0].mxu0
        %v413 = vadd.f32 %v251, %v412
        %v414 = vpop.f32.mrb[0].mxu0
        %415 = vmatprep.mubr.f32.mxu0 0.0
        %416 = vmatmul.mubr.f32.gmra.mrb[0].mxu0 %v284
        %v417 = vpop.f32.mrb[0].mxu0
        %v418 = vadd.f32 %v251, %v417
        %v419 = vpop.f32.mrb[0].mxu0
        %420 = vmatprep.mubr.f32.mxu0 0.0
        %421 = vmatmul.mubr.f32.gmra.mrb[0].mxu0 %v287
        %v422 = vpop.f32.mrb[0].mxu0
        %v423 = vadd.f32 %v251, %v422
        %v424 = vpop.f32.mrb[0].mxu0
        %425 = vmatprep.mubr.f32.mxu0 0.0
        %426 = vmatmul.mubr.f32.gmra.mrb[0].mxu0 %v290
        %v427 = vpop.f32.mrb[0].mxu0
        %v428 = vadd.f32 %v251, %v427
        %v429 = vpop.f32.mrb[0].mxu0
        %430 = vmatprep.mubr.f32.mxu0 0.0
        %431 = vmatmul.mubr.f32.gmra.mrb[0].mxu0 %v293
        %v432 = vpop.f32.mrb[0].mxu0
        %v433 = vadd.f32 %v251, %v432
        %v434 = vpop.f32.mrb[0].mxu0
        %435 = vmatprep.mubr.f32.mxu0 0.0
        %436 = vmatmul.mubr.f32.gmra.mrb[0].mxu0 %v296
        %v437 = vpop.f32.mrb[0].mxu0
        %v438 = vadd.f32 %v251, %v437
        %v439 = vpop.f32.mrb[0].mxu0
        %440 = vmatprep.mubr.f32.mxu0 0.0
        %441 = vmatmul.mubr.f32.gmra.mrb[0].mxu0 %v299
        %v442 = vpop.f32.mrb[0].mxu0
        %v443 = vadd.f32 %v251, %v442
        %v444 = vpop.f32.mrb[0].mxu0
        %445 = vdwg.mxu0
        %v446 = vmax.f32 %v368, 0.0
        %v447 = vmax.f32 %v373, 0.0
        %v448 = vmax.f32 %v378, 0.0
        %v449 = vmax.f32 %v383, 0.0
        %v450 = vmax.f32 %v388, 0.0
        %v451 = vmax.f32 %v393, 0.0
        %v452 = vmax.f32 %v398, 0.0
        %v453 = vmax.f32 %v403, 0.0
        %v454 = vmax.f32 %v408, 0.0
        %v455 = vmax.f32 %v413, 0.0
        %v456 = vmax.f32 %v418, 0.0
        %v457 = vmax.f32 %v423, 0.0
        %v458 = vmax.f32 %v428, 0.0
        %v459 = vmax.f32 %v433, 0.0
        %v460 = vmax.f32 %v438, 0.0
        %v461 = vmax.f32 %v443, 0.0
        %vm462 = vcmask 523264
        %v464 = vsel %vm462, %v220, 0
        %v467 = vsel %vm462, %v221, 0
        %v470 = vsel %vm462, %v222, 0
        %v473 = vsel %vm462, %v223, 0
        %v476 = vsel %vm462, %v224, 0
        %v479 = vsel %vm462, %v225, 0
        %v482 = vsel %vm462, %v226, 0
        %v485 = vsel %vm462, %v227, 0
        %487 = vmatprep.subr.mxu0 0.0
        %488 = vmatpush1.msra.mxu0 %v447
        %489 = vmatprep.subr.mxu0 0.0
        %490 = vmatpush1.msra.mxu0 %v449
        %491 = vmatprep.subr.mxu0 0.0
        %492 = vmatpush1.msra.mxu0 %v451
        %493 = vmatprep.subr.mxu0 0.0
        %494 = vmatpush1.msra.mxu0 %v453
        %495 = vmatprep.subr.mxu0 0.0
        %496 = vmatpush1.msra.mxu0 %v455
        %497 = vmatprep.subr.mxu0 0.0
        %498 = vmatpush1.msra.mxu0 %v457
        %499 = vmatprep.subr.mxu0 0.0
        %500 = vmatpush1.msra.mxu0 %v459
        %501 = vmatprep.subr.mxu0 0.0
        %502 = vmatpush1.msra.mxu0 %v461
        %503 = vmatprep.subr.mxu0 0.0
        %504 = vmatpush1.msra.mxu0 0.0
        %505 = vmatprep.subr.mxu0 0.0
        %506 = vmatpush1.msra.mxu0 0.0
        %507 = vmatprep.subr.mxu0 0.0
        %508 = vmatpush1.msra.mxu0 0.0
        %509 = vmatprep.subr.mxu0 0.0
        %510 = vmatpush1.msra.mxu0 0.0
        %511 = vmatprep.subr.mxu0 0.0
        %512 = vmatpush1.msra.mxu0 0.0
        %513 = vmatprep.subr.mxu0 0.0
        %514 = vmatpush1.msra.mxu0 0.0
        %515 = vmatprep.subr.mxu0 0.0
        %516 = vmatpush1.msra.mxu0 0.0
        %517 = vmatprep.subr.mxu0 0.0
        %518 = vmatpush1.msra.mxu0 0.0
        %519 = vmatprep.subr.mxu0 0.0
        %520 = vmatpush1.msra.mxu0 0.0
        %521 = vmatprep.subr.mxu0 0.0
        %522 = vmatpush1.msra.mxu0 0.0
        %523 = vmatprep.subr.mxu0 0.0
        %524 = vmatpush1.msra.mxu0 0.0
        %525 = vmatprep.subr.mxu0 0.0
        %526 = vmatpush1.msra.mxu0 0.0
        %527 = vmatprep.subr.mxu0 0.0
        %528 = vmatpush1.msra.mxu0 0.0
        %529 = vmatprep.subr.mxu0 0.0
        %530 = vmatpush1.msra.mxu0 0.0
        %531 = vmatprep.subr.mxu0 0.0
        %532 = vmatpush1.msra.mxu0 0.0
        %533 = vmatprep.subr.mxu0 0.0
        %534 = vmatpush1.msra.mxu0 0.0
        %535 = vmatprep.subr.mxu0 0.0
        %536 = vmatpush1.msra.mxu0 0.0
        %537 = vmatprep.subr.mxu0 0.0
        %538 = vmatpush1.msra.mxu0 0.0
        %539 = vmatprep.subr.mxu0 0.0
        %540 = vmatpush1.msra.mxu0 0.0
        %541 = vmatprep.subr.mxu0 0.0
        %542 = vmatpush1.msra.mxu0 0.0
        %543 = vmatprep.subr.mxu0 0.0
        %544 = vmatpush1.msra.mxu0 0.0
        %545 = vmatprep.subr.mxu0 0.0
        %546 = vmatpush1.msra.mxu0 0.0
        %547 = vmatprep.subr.mxu0 0.0
        %548 = vmatpush1.msra.mxu0 0.0
        %549 = vmatprep.subr.mxu0 0.0
        %550 = vmatpush1.msra.mxu0 0.0
        %551 = vmatprep.mubr.f32.mxu0 0.0
        %552 = vmatmul.mubr.f32.gmra.mrb[0].mxu0 %v464
        %v553 = vpop.f32.mrb[0].mxu0
        %v554 = vadd.f32 0.0, %v553
        %v555 = vpop.f32.mrb[0].mxu0
        %556 = vmatprep.mubr.f32.mxu0 0.0
        %557 = vmatmul.mubr.f32.gmra.mrb[0].mxu0 %v467
        %v558 = vpop.f32.mrb[0].mxu0
        %v559 = vadd.f32 0.0, %v558
        %v560 = vpop.f32.mrb[0].mxu0
        %561 = vmatprep.mubr.f32.mxu0 0.0
        %562 = vmatmul.mubr.f32.gmra.mrb[0].mxu0 %v470
        %v563 = vpop.f32.mrb[0].mxu0
        %v564 = vadd.f32 0.0, %v563
        %v565 = vpop.f32.mrb[0].mxu0
        %566 = vmatprep.mubr.f32.mxu0 0.0
        %567 = vmatmul.mubr.f32.gmra.mrb[0].mxu0 %v473
        %v568 = vpop.f32.mrb[0].mxu0
        %v569 = vadd.f32 0.0, %v568
        %v570 = vpop.f32.mrb[0].mxu0
        %571 = vmatprep.mubr.f32.mxu0 0.0
        %572 = vmatmul.mubr.f32.gmra.mrb[0].mxu0 %v476
        %v573 = vpop.f32.mrb[0].mxu0
        %v574 = vadd.f32 0.0, %v573
        %v575 = vpop.f32.mrb[0].mxu0
        %576 = vmatprep.mubr.f32.mxu0 0.0
        %577 = vmatmul.mubr.f32.gmra.mrb[0].mxu0 %v479
        %v578 = vpop.f32.mrb[0].mxu0
        %v579 = vadd.f32 0.0, %v578
        %v580 = vpop.f32.mrb[0].mxu0
        %581 = vmatprep.mubr.f32.mxu0 0.0
        %582 = vmatmul.mubr.f32.gmra.mrb[0].mxu0 %v482
        %v583 = vpop.f32.mrb[0].mxu0
        %v584 = vadd.f32 0.0, %v583
        %v585 = vpop.f32.mrb[0].mxu0
        %586 = vmatprep.mubr.f32.mxu0 0.0
        %587 = vmatmul.mubr.f32.gmra.mrb[0].mxu0 %v485
        %v588 = vpop.f32.mrb[0].mxu0
        %v589 = vadd.f32 0.0, %v588
        %v590 = vpop.f32.mrb[0].mxu0
        %591 = vdwg.mxu0
        %v592 = vmul.f32 %v554, %v446
        %v593 = vmul.f32 %v559, %v448
        %v594 = vmul.f32 %v564, %v450
        %v595 = vmul.f32 %v569, %v452
        %v596 = vmul.f32 %v574, %v454
        %v597 = vmul.f32 %v579, %v456
        %v598 = vmul.f32 %v584, %v458
        %v599 = vmul.f32 %v589, %v460
        %v600 = vmul.f32 %v592, -0.3
        %v601 = vmul.f32 %v593, -0.3
        %v602 = vmul.f32 %v594, -0.3
        %v603 = vmul.f32 %v595, -0.3
        %v604 = vmul.f32 %v596, -0.3
        %v605 = vmul.f32 %v597, -0.3
        %v606 = vmul.f32 %v598, -0.3
        %v607 = vmul.f32 %v599, -0.3
        %v608 = vmul.f32 %v592, 0.3
        %v609 = vmul.f32 %v593, 0.3
        %v610 = vmul.f32 %v594, 0.3
        %v611 = vmul.f32 %v595, 0.3
        %v612 = vmul.f32 %v596, 0.3
        %v613 = vmul.f32 %v597, 0.3
        %v614 = vmul.f32 %v598, 0.3
        %v615 = vmul.f32 %v599, 0.3
        %v616 = vmul.f32 %v447, 0.1
        %v617 = vmul.f32 %v449, 0.1
        %v618 = vmul.f32 %v451, 0.1
        %v619 = vmul.f32 %v453, 0.1
        %v620 = vmul.f32 %v455, 0.1
        %v621 = vmul.f32 %v457, 0.1
        %v622 = vmul.f32 %v459, 0.1
        %v623 = vmul.f32 %v461, 0.1
        %v624 = vsub.f32 %v608, %v616
        %v625 = vsub.f32 %v609, %v617
        %v626 = vsub.f32 %v610, %v618
        %v627 = vsub.f32 %v611, %v619
        %v628 = vsub.f32 %v612, %v620
        %v629 = vsub.f32 %v613, %v621
        %v630 = vsub.f32 %v614, %v622
        %v631 = vsub.f32 %v615, %v623
        %v632 = vsel %vm252, %v600, 0.0
        %633 = vadd.xlane.f32.xlu0 %v632
        %v634 = vpop.xlane.xlu0 %633
        %v635 = vsel %vm252, %v624, 0.0
        %636 = vadd.xlane.f32.xlu0 %v635
        %v637 = vpop.xlane.xlu0 %636
        %v638 = vsel %vm252, %v616, 0.0
        %639 = vadd.xlane.f32.xlu0 %v638
        %v640 = vpop.xlane.xlu0 %639
        %v641 = vsel %vm252, %v601, 0.0
        %642 = vadd.xlane.f32.xlu0 %v641
        %v643 = vpop.xlane.xlu0 %642
        %v644 = vsel %vm252, %v625, 0.0
        %645 = vadd.xlane.f32.xlu0 %v644
        %v646 = vpop.xlane.xlu0 %645
        %v647 = vsel %vm252, %v617, 0.0
        %648 = vadd.xlane.f32.xlu0 %v647
        %v649 = vpop.xlane.xlu0 %648
        %v650 = vsel %vm252, %v602, 0.0
        %651 = vadd.xlane.f32.xlu0 %v650
        %v652 = vpop.xlane.xlu0 %651
        %v653 = vsel %vm252, %v626, 0.0
        %654 = vadd.xlane.f32.xlu0 %v653
        %v655 = vpop.xlane.xlu0 %654
        %v656 = vsel %vm252, %v618, 0.0
        %657 = vadd.xlane.f32.xlu0 %v656
        %v658 = vpop.xlane.xlu0 %657
        %v659 = vsel %vm252, %v603, 0.0
        %660 = vadd.xlane.f32.xlu0 %v659
        %v661 = vpop.xlane.xlu0 %660
        %v662 = vsel %vm252, %v627, 0.0
        %663 = vadd.xlane.f32.xlu0 %v662
        %v664 = vpop.xlane.xlu0 %663
        %v665 = vsel %vm252, %v619, 0.0
        %666 = vadd.xlane.f32.xlu0 %v665
        %v667 = vpop.xlane.xlu0 %666
        %v668 = vsel %vm252, %v604, 0.0
        %669 = vadd.xlane.f32.xlu0 %v668
        %v670 = vpop.xlane.xlu0 %669
        %v671 = vsel %vm252, %v628, 0.0
        %672 = vadd.xlane.f32.xlu0 %v671
        %v673 = vpop.xlane.xlu0 %672
        %v674 = vsel %vm252, %v620, 0.0
        %675 = vadd.xlane.f32.xlu0 %v674
        %v676 = vpop.xlane.xlu0 %675
        %v677 = vsel %vm252, %v605, 0.0
        %678 = vadd.xlane.f32.xlu0 %v677
        %v679 = vpop.xlane.xlu0 %678
        %v680 = vsel %vm252, %v629, 0.0
        %681 = vadd.xlane.f32.xlu0 %v680
        %v682 = vpop.xlane.xlu0 %681
        %v683 = vsel %vm252, %v621, 0.0
        %684 = vadd.xlane.f32.xlu0 %v683
        %v685 = vpop.xlane.xlu0 %684
        %v686 = vsel %vm252, %v606, 0.0
        %687 = vadd.xlane.f32.xlu0 %v686
        %v688 = vpop.xlane.xlu0 %687
        %v689 = vsel %vm252, %v630, 0.0
        %690 = vadd.xlane.f32.xlu0 %v689
        %v691 = vpop.xlane.xlu0 %690
        %v692 = vsel %vm252, %v622, 0.0
        %693 = vadd.xlane.f32.xlu0 %v692
        %v694 = vpop.xlane.xlu0 %693
        %v695 = vsel %vm252, %v607, 0.0
        %696 = vadd.xlane.f32.xlu0 %v695
        %v697 = vpop.xlane.xlu0 %696
        %v698 = vsel %vm252, %v631, 0.0
        %699 = vadd.xlane.f32.xlu0 %v698
        %v700 = vpop.xlane.xlu0 %699
        %v701 = vsel %vm252, %v623, 0.0
        %702 = vadd.xlane.f32.xlu0 %v701
        %v703 = vpop.xlane.xlu0 %702
        %v704 = vrcp.pop 32.0
        %v705 = vmul.f32 %v634, %v704
        %v706 = vmul.f32 %v637, %v704
        %v707 = vmul.f32 %v640, %v704
        %v708 = vmul.f32 %v643, %v704
        %v709 = vmul.f32 %v646, %v704
        %v710 = vmul.f32 %v649, %v704
        %v711 = vmul.f32 %v652, %v704
        %v712 = vmul.f32 %v655, %v704
        %v713 = vmul.f32 %v658, %v704
        %v714 = vmul.f32 %v661, %v704
        %v715 = vmul.f32 %v664, %v704
        %v716 = vmul.f32 %v667, %v704
        %v717 = vmul.f32 %v670, %v704
        %v718 = vmul.f32 %v673, %v704
        %v719 = vmul.f32 %v676, %v704
        %v720 = vmul.f32 %v679, %v704
        %v721 = vmul.f32 %v682, %v704
        %v722 = vmul.f32 %v685, %v704
        %v723 = vmul.f32 %v688, %v704
        %v724 = vmul.f32 %v691, %v704
        %v725 = vmul.f32 %v694, %v704
        %v726 = vmul.f32 %v697, %v704
        %v727 = vmul.f32 %v700, %v704
        %v728 = vmul.f32 %v703, %v704
        %v729 = vsub.f32 %v600, %v705
        %v730 = vsub.f32 %v624, %v706
        %v731 = vsub.f32 %v616, %v707
        %v732 = vsub.f32 %v601, %v708
        %v733 = vsub.f32 %v625, %v709
        %v734 = vsub.f32 %v617, %v710
        %v735 = vsub.f32 %v602, %v711
        %v736 = vsub.f32 %v626, %v712
        %v737 = vsub.f32 %v618, %v713
        %v738 = vsub.f32 %v603, %v714
        %v739 = vsub.f32 %v627, %v715
        %v740 = vsub.f32 %v619, %v716
        %v741 = vsub.f32 %v604, %v717
        %v742 = vsub.f32 %v628, %v718
        %v743 = vsub.f32 %v620, %v719
        %v744 = vsub.f32 %v605, %v720
        %v745 = vsub.f32 %v629, %v721
        %v746 = vsub.f32 %v621, %v722
        %v747 = vsub.f32 %v606, %v723
        %v748 = vsub.f32 %v630, %v724
        %v749 = vsub.f32 %v622, %v725
        %v750 = vsub.f32 %v607, %v726
        %v751 = vsub.f32 %v631, %v727
        %v752 = vsub.f32 %v623, %v728
        %v753 = vmul.f32 %v729, %v729
        %v754 = vmul.f32 %v730, %v730
        %v755 = vmul.f32 %v731, %v731
        %v756 = vmul.f32 %v732, %v732
        %v757 = vmul.f32 %v733, %v733
        %v758 = vmul.f32 %v734, %v734
        %v759 = vmul.f32 %v735, %v735
        %v760 = vmul.f32 %v736, %v736
        %v761 = vmul.f32 %v737, %v737
        %v762 = vmul.f32 %v738, %v738
        %v763 = vmul.f32 %v739, %v739
        %v764 = vmul.f32 %v740, %v740
        %v765 = vmul.f32 %v741, %v741
        %v766 = vmul.f32 %v742, %v742
        %v767 = vmul.f32 %v743, %v743
        %v768 = vmul.f32 %v744, %v744
        %v769 = vmul.f32 %v745, %v745
        %v770 = vmul.f32 %v746, %v746
        %v771 = vmul.f32 %v747, %v747
        %v772 = vmul.f32 %v748, %v748
        %v773 = vmul.f32 %v749, %v749
        %v774 = vmul.f32 %v750, %v750
        %v775 = vmul.f32 %v751, %v751
        %v776 = vmul.f32 %v752, %v752
        %v777 = vsel %vm252, %v753, 0.0
        %778 = vadd.xlane.f32.xlu0 %v777
        %v779 = vpop.xlane.xlu0 %778
        %v780 = vsel %vm252, %v754, 0.0
        %781 = vadd.xlane.f32.xlu0 %v780
        %v782 = vpop.xlane.xlu0 %781
        %v783 = vsel %vm252, %v755, 0.0
        %784 = vadd.xlane.f32.xlu0 %v783
        %v785 = vpop.xlane.xlu0 %784
        %v786 = vsel %vm252, %v756, 0.0
        %787 = vadd.xlane.f32.xlu0 %v786
        %v788 = vpop.xlane.xlu0 %787
        %v789 = vsel %vm252, %v757, 0.0
        %790 = vadd.xlane.f32.xlu0 %v789
        %v791 = vpop.xlane.xlu0 %790
        %v792 = vsel %vm252, %v758, 0.0
        %793 = vadd.xlane.f32.xlu0 %v792
        %v794 = vpop.xlane.xlu0 %793
        %v795 = vsel %vm252, %v759, 0.0
        %796 = vadd.xlane.f32.xlu0 %v795
        %v797 = vpop.xlane.xlu0 %796
        %v798 = vsel %vm252, %v760, 0.0
        %799 = vadd.xlane.f32.xlu0 %v798
        %v800 = vpop.xlane.xlu0 %799
        %v801 = vsel %vm252, %v761, 0.0
        %802 = vadd.xlane.f32.xlu0 %v801
        %v803 = vpop.xlane.xlu0 %802
        %v804 = vsel %vm252, %v762, 0.0
        %805 = vadd.xlane.f32.xlu0 %v804
        %v806 = vpop.xlane.xlu0 %805
        %v807 = vsel %vm252, %v763, 0.0
        %808 = vadd.xlane.f32.xlu0 %v807
        %v809 = vpop.xlane.xlu0 %808
        %v810 = vsel %vm252, %v764, 0.0
        %811 = vadd.xlane.f32.xlu0 %v810
        %v812 = vpop.xlane.xlu0 %811
        %v813 = vsel %vm252, %v765, 0.0
        %814 = vadd.xlane.f32.xlu0 %v813
        %v815 = vpop.xlane.xlu0 %814
        %v816 = vsel %vm252, %v766, 0.0
        %817 = vadd.xlane.f32.xlu0 %v816
        %v818 = vpop.xlane.xlu0 %817
        %v819 = vsel %vm252, %v767, 0.0
        %820 = vadd.xlane.f32.xlu0 %v819
        %v821 = vpop.xlane.xlu0 %820
        %v822 = vsel %vm252, %v768, 0.0
        %823 = vadd.xlane.f32.xlu0 %v822
        %v824 = vpop.xlane.xlu0 %823
        %v825 = vsel %vm252, %v769, 0.0
        %826 = vadd.xlane.f32.xlu0 %v825
        %v827 = vpop.xlane.xlu0 %826
        %v828 = vsel %vm252, %v770, 0.0
        %829 = vadd.xlane.f32.xlu0 %v828
        %v830 = vpop.xlane.xlu0 %829
        %v831 = vsel %vm252, %v771, 0.0
        %832 = vadd.xlane.f32.xlu0 %v831
        %v833 = vpop.xlane.xlu0 %832
        %v834 = vsel %vm252, %v772, 0.0
        %835 = vadd.xlane.f32.xlu0 %v834
        %v836 = vpop.xlane.xlu0 %835
        %v837 = vsel %vm252, %v773, 0.0
        %838 = vadd.xlane.f32.xlu0 %v837
        %v839 = vpop.xlane.xlu0 %838
        %v840 = vsel %vm252, %v774, 0.0
        %841 = vadd.xlane.f32.xlu0 %v840
        %v842 = vpop.xlane.xlu0 %841
        %v843 = vsel %vm252, %v775, 0.0
        %844 = vadd.xlane.f32.xlu0 %v843
        %v845 = vpop.xlane.xlu0 %844
        %v846 = vsel %vm252, %v776, 0.0
        %847 = vadd.xlane.f32.xlu0 %v846
        %v848 = vpop.xlane.xlu0 %847
        %v849 = vmul.f32 %v779, %v704
        %v850 = vmul.f32 %v782, %v704
        %v851 = vmul.f32 %v785, %v704
        %v852 = vmul.f32 %v788, %v704
        %v853 = vmul.f32 %v791, %v704
        %v854 = vmul.f32 %v794, %v704
        %v855 = vmul.f32 %v797, %v704
        %v856 = vmul.f32 %v800, %v704
        %v857 = vmul.f32 %v803, %v704
        %v858 = vmul.f32 %v806, %v704
        %v859 = vmul.f32 %v809, %v704
        %v860 = vmul.f32 %v812, %v704
        %v861 = vmul.f32 %v815, %v704
        %v862 = vmul.f32 %v818, %v704
        %v863 = vmul.f32 %v821, %v704
        %v864 = vmul.f32 %v824, %v704
        %v865 = vmul.f32 %v827, %v704
        %v866 = vmul.f32 %v830, %v704
        %v867 = vmul.f32 %v833, %v704
        %v868 = vmul.f32 %v836, %v704
        %v869 = vmul.f32 %v839, %v704
        %v870 = vmul.f32 %v842, %v704
        %v871 = vmul.f32 %v845, %v704
        %v872 = vmul.f32 %v848, %v704
        %v873 = vadd.f32 %v849, 1e-05
        %v874 = vadd.f32 %v850, 1e-05
        %v875 = vadd.f32 %v851, 1e-05
        %v876 = vadd.f32 %v852, 1e-05
        %v877 = vadd.f32 %v853, 1e-05
        %v878 = vadd.f32 %v854, 1e-05
        %v879 = vadd.f32 %v855, 1e-05
        %v880 = vadd.f32 %v856, 1e-05
        %v881 = vadd.f32 %v857, 1e-05
        %v882 = vadd.f32 %v858, 1e-05
        %v883 = vadd.f32 %v859, 1e-05
        %v884 = vadd.f32 %v860, 1e-05
        %v885 = vadd.f32 %v861, 1e-05
        %v886 = vadd.f32 %v862, 1e-05
        %v887 = vadd.f32 %v863, 1e-05
        %v888 = vadd.f32 %v864, 1e-05
        %v889 = vadd.f32 %v865, 1e-05
        %v890 = vadd.f32 %v866, 1e-05
        %v891 = vadd.f32 %v867, 1e-05
        %v892 = vadd.f32 %v868, 1e-05
        %v893 = vadd.f32 %v869, 1e-05
        %v894 = vadd.f32 %v870, 1e-05
        %v895 = vadd.f32 %v871, 1e-05
        %v896 = vadd.f32 %v872, 1e-05
        %v897 = vrsqrt.pop %v873
        %v898 = vrsqrt.pop %v874
        %v899 = vrsqrt.pop %v875
        %v900 = vrsqrt.pop %v876
        %v901 = vrsqrt.pop %v877
        %v902 = vrsqrt.pop %v878
        %v903 = vrsqrt.pop %v879
        %v904 = vrsqrt.pop %v880
        %v905 = vrsqrt.pop %v881
        %v906 = vrsqrt.pop %v882
        %v907 = vrsqrt.pop %v883
        %v908 = vrsqrt.pop %v884
        %v909 = vrsqrt.pop %v885
        %v910 = vrsqrt.pop %v886
        %v911 = vrsqrt.pop %v887
        %v912 = vrsqrt.pop %v888
        %v913 = vrsqrt.pop %v889
        %v914 = vrsqrt.pop %v890
        %v915 = vrsqrt.pop %v891
        %v916 = vrsqrt.pop %v892
        %v917 = vrsqrt.pop %v893
        %v918 = vrsqrt.pop %v894
        %v919 = vrsqrt.pop %v895
        %v920 = vrsqrt.pop %v896
        %v921 = vmul.f32 %v729, %v897
        %v922 = vmul.f32 %v730, %v898
        %v923 = vmul.f32 %v731, %v899
        %v924 = vmul.f32 %v732, %v900
        %v925 = vmul.f32 %v733, %v901
        %v926 = vmul.f32 %v734, %v902
        %v927 = vmul.f32 %v735, %v903
        %v928 = vmul.f32 %v736, %v904
        %v929 = vmul.f32 %v737, %v905
        %v930 = vmul.f32 %v738, %v906
        %v931 = vmul.f32 %v739, %v907
        %v932 = vmul.f32 %v740, %v908
        %v933 = vmul.f32 %v741, %v909
        %v934 = vmul.f32 %v742, %v910
        %v935 = vmul.f32 %v743, %v911
        %v936 = vmul.f32 %v744, %v912
        %v937 = vmul.f32 %v745, %v913
        %v938 = vmul.f32 %v746, %v914
        %v939 = vmul.f32 %v747, %v915
        %v940 = vmul.f32 %v748, %v916
        %v941 = vmul.f32 %v749, %v917
        %v942 = vmul.f32 %v750, %v918
        %v943 = vmul.f32 %v751, %v919
        %v944 = vmul.f32 %v752, %v920
        %v945 = vlaneseq
        %v946 = vshrl.u32 %v945, 7
        %v947 = vsub.s32 0, %v946
        %v948 = vrot.slane %v218, %v947
        %v949 = vmul.f32 %v921, %v948
        %v950 = vmul.f32 %v922, %v948
        %v951 = vmul.f32 %v923, %v948
        %v952 = vmul.f32 %v924, %v948
        %v953 = vmul.f32 %v925, %v948
        %v954 = vmul.f32 %v926, %v948
        %v955 = vmul.f32 %v927, %v948
        %v956 = vmul.f32 %v928, %v948
        %v957 = vmul.f32 %v929, %v948
        %v958 = vmul.f32 %v930, %v948
        %v959 = vmul.f32 %v931, %v948
        %v960 = vmul.f32 %v932, %v948
        %v961 = vmul.f32 %v933, %v948
        %v962 = vmul.f32 %v934, %v948
        %v963 = vmul.f32 %v935, %v948
        %v964 = vmul.f32 %v936, %v948
        %v965 = vmul.f32 %v937, %v948
        %v966 = vmul.f32 %v938, %v948
        %v967 = vmul.f32 %v939, %v948
        %v968 = vmul.f32 %v940, %v948
        %v969 = vmul.f32 %v941, %v948
        %v970 = vmul.f32 %v942, %v948
        %v971 = vmul.f32 %v943, %v948
        %v972 = vmul.f32 %v944, %v948
        %v973 = vlaneseq
        %v974 = vshrl.u32 %v973, 7
        %v975 = vsub.s32 0, %v974
        %v976 = vrot.slane %v219, %v975
        %v977 = vadd.f32 %v949, %v976
        %v978 = vadd.f32 %v950, %v976
        %v979 = vadd.f32 %v951, %v976
        %v980 = vadd.f32 %v952, %v976
        %v981 = vadd.f32 %v953, %v976
        %v982 = vadd.f32 %v954, %v976
        %v983 = vadd.f32 %v955, %v976
        %v984 = vadd.f32 %v956, %v976
        %v985 = vadd.f32 %v957, %v976
        %v986 = vadd.f32 %v958, %v976
        %v987 = vadd.f32 %v959, %v976
        %v988 = vadd.f32 %v960, %v976
        %v989 = vadd.f32 %v961, %v976
        %v990 = vadd.f32 %v962, %v976
        %v991 = vadd.f32 %v963, %v976
        %v992 = vadd.f32 %v964, %v976
        %v993 = vadd.f32 %v965, %v976
        %v994 = vadd.f32 %v966, %v976
        %v995 = vadd.f32 %v967, %v976
        %v996 = vadd.f32 %v968, %v976
        %v997 = vadd.f32 %v969, %v976
        %v998 = vadd.f32 %v970, %v976
        %v999 = vadd.f32 %v971, %v976
        %v1000 = vadd.f32 %v972, %v976
        %1001 = vst.msk [vmem:[%s214] sm:$0xff] %vm252, %v977
        %1002 = vst.msk [vmem:[%s214 + $0x8] sm:$0xff] %vm252, %v978
        %1003 = vst.msk [vmem:[%s214 + $0x10] sm:$0xff] %vm252, %v979
        %1004 = vst.msk [vmem:[%s214 + $0x18] sm:$0xff] %vm252, %v980
        %1005 = vst.msk [vmem:[%s214 + $0x20] sm:$0xff] %vm252, %v981
        %1006 = vst.msk [vmem:[%s214 + $0x28] sm:$0xff] %vm252, %v982
        %1007 = vst.msk [vmem:[%s214 + $0x30] sm:$0xff] %vm252, %v983
        %1008 = vst.msk [vmem:[%s214 + $0x38] sm:$0xff] %vm252, %v984
        %1009 = vst.msk [vmem:[%s214 + $0x40] sm:$0xff] %vm252, %v985
        %1010 = vst.msk [vmem:[%s214 + $0x48] sm:$0xff] %vm252, %v986
        %1011 = vst.msk [vmem:[%s214 + $0x50] sm:$0xff] %vm252, %v987
        %1012 = vst.msk [vmem:[%s214 + $0x58] sm:$0xff] %vm252, %v988
        %1013 = vst.msk [vmem:[%s214 + $0x60] sm:$0xff] %vm252, %v989
        %1014 = vst.msk [vmem:[%s214 + $0x68] sm:$0xff] %vm252, %v990
        %1015 = vst.msk [vmem:[%s214 + $0x70] sm:$0xff] %vm252, %v991
        %1016 = vst.msk [vmem:[%s214 + $0x78] sm:$0xff] %vm252, %v992
        %1017 = vst.msk [vmem:[%s214 + $0x80] sm:$0xff] %vm252, %v993
        %1018 = vst.msk [vmem:[%s214 + $0x88] sm:$0xff] %vm252, %v994
        %1019 = vst.msk [vmem:[%s214 + $0x90] sm:$0xff] %vm252, %v995
        %1020 = vst.msk [vmem:[%s214 + $0x98] sm:$0xff] %vm252, %v996
        %1021 = vst.msk [vmem:[%s214 + $0xa0] sm:$0xff] %vm252, %v997
        %1022 = vst.msk [vmem:[%s214 + $0xa8] sm:$0xff] %vm252, %v998
        %1023 = vst.msk [vmem:[%s214 + $0xb0] sm:$0xff] %vm252, %v999
        %1024 = vst.msk [vmem:[%s214 + $0xb8] sm:$0xff] %vm252, %v1000
        %s1025 = sand.u32 %s96, 1
        %s1026 = scalar_lea.sflag [#allocation4], %s1025
        %s1027 = sand.u32 %s96, 1
        %s1028 = smul.addr %s1027, 192
        %s1029 = scalar_lea.vmem [#allocation5], %s1028
        // Predicated region
        $region37: #{tpu_custom_call.1} parent=31 // pred_check
          %p1030 = pneg %p106
        $region38: #{tpu_custom_call.1} parent=31 // pred_check_branch
          %1032 = sbr.rel (%p1030) target = $region40
        $region39: #{tpu_custom_call.1} parent=31 // pred_region
          %s1033 = smul.u32 8, %s20
          %s1035 = ssub.s32 3072, 3072
          %1036 = vsyncadd %s1026, %s1035
          %s1037 = smul.addr %s1033, 3
          %s1038 = smul.addr %s1037, 128
          %s1039 = scalar_lea.hbm %s3, %s1038
          %s1040 = sshll.u32 %s1029, 4
          %s1041 = int_to_ptr.vmem [resolvable:$true] %s1040
          %1046 = dma.vmem_to_hbm [thread:$0]  %s1041, 3072, %s1039, %s1026, 128, 128, 8
        $region40: #{tpu_custom_call.1} parent=31 // pred_fallthru
          _
      $region32: #{tpu_custom_call.1} parent=5 // pred_fallthru
        _
      %p1047 = scmp.le.s32.totalorder 2, %s15
      // Predicated region
      $region41: #{tpu_custom_call.1} parent=5 // pred_check
        %p1048 = pneg %p1047
      $region42: #{tpu_custom_call.1} parent=5 // pred_check_branch
        %1050 = sbr.rel (%p1048) target = $region44
      $region43: #{tpu_custom_call.1} parent=5 // pred_region
        %s1051 = ssub.s32 %s15, 2
        // Predicated region
        $region45: #{tpu_custom_call.1} parent=43 // pred_check
          %p1052 = pneg %p112
        $region46: #{tpu_custom_call.1} parent=43 // pred_check_branch
          %1054 = sbr.rel (%p1052) target = $region48
        $region47: #{tpu_custom_call.1} parent=43 // pred_region
          %s1055 = sand.u32 %s97, 1
          %s1056 = scalar_lea.sflag [#allocation4], %s1055
          %s1057 = sand.u32 %s97, 1
          %s1058 = smul.addr %s1057, 192
          %s1059 = scalar_lea.vmem [#allocation5], %s1058
          %1060 = dma.done %s1056, 3072
        $region48: #{tpu_custom_call.1} parent=43 // pred_fallthru
          _
      $region44: #{tpu_custom_call.1} parent=5 // pred_fallthru
        _
    $region6: #{tpu_custom_call.1} parent=1 // loop_footer
      %s19 = sadd.s32 1, %s15
    $region7: #{tpu_custom_call.1} parent=1 // loop_footer_branch
      %14 = sbr.rel target = $region3
    $region8: #{tpu_custom_call.1} parent=1 // loop_exit
      _
    %1061 = vsyncpa [#allocation3], 1
    %s1062 = scalar_lea.sflag [#allocation3], 1
    %1063 = vsyncpa %s1062, 1
    %1064 = vsyncpa [#allocation4], 1
    %s1065 = scalar_lea.sflag [#allocation4], 1
    %1066 = vsyncpa %s1065, 1

</llo_original>
